<compile_context>
chip_gen: v7x
topology: tpu7x:2x2x1
jax: 0.10.0
libtpu: 0.0.40
codegen_flags: <defaults>
</compile_context>

<pallas_src>
import functools

import jax
import jax.numpy as jnp
from jax import lax
from jax.experimental import pallas as pl
from jax.experimental.pallas import tpu as pltpu


# --------------------------------------------------------------------------
# Tile / budget selection
# --------------------------------------------------------------------------
def _vmem_budget_bytes():
    """Per-generation VMEM budget (with headroom for compiler scratch)."""
    cap = 0
    try:
        cap = int(getattr(pltpu.get_tpu_info(), "vmem_capacity_bytes", 0))
    except Exception:
        cap = 0
    if cap >= 96 * 1024 * 1024:          # v5e / v6e: 128 MiB physical per core
        return 96 * 1024 * 1024
    return 40 * 1024 * 1024              # v7x (64 MiB) or unknown: stay safe


def _round_down(v, m):
    return max((v // m) * m, m)


def _phase1_tiles(rows, hw, itemsize, budget):
    """(row_tile, spatial_tile) for the streamed (rows, HW) input block,
    sized so 2 x block_bytes (double buffering) stays well inside budget."""
    max_block = int(budget * 0.4)
    # rows-per-block target: full (8,128) packing + efficient DMA, but bounded
    row_goal = rows if rows <= 512 else _round_down(512, 8)
    ts_cap = max(max_block // (row_goal * itemsize), 128)
    ts = hw if hw <= ts_cap else _round_down(ts_cap, 128)
    rt_cap = max(max_block // (ts * itemsize), 8)
    rt = rows if rows <= rt_cap else _round_down(rt_cap, 8)
    return rt, ts


def _phase2_tile(n, c_out, hw, itemsize, budget):
    """Lane-dense spatial tile for the write-only broadcast (decoupled from
    phase 1); >= 2 tiles when possible so both v7x TensorCores get work."""
    max_block = int(budget * 0.4)
    cap = _round_down(max(max_block // (n * c_out * itemsize), 128), 128)
    if hw <= 128:
        return hw
    half = -(-hw // 2)                      # ceil(hw / 2)
    balanced = -(-half // 128) * 128        # round up to a multiple of 128
    return min(cap, balanced)


# --------------------------------------------------------------------------
# Kernels
# --------------------------------------------------------------------------
def _reduce_kernel(x_ref, sum_ref, *, hw, ts):
    # x_ref:   (RT, TS)   spatial tile of the flattened (N*C_in, HW) input
    # sum_ref: (RT, 1)    fp32 per-row spatial sum -> mean at the last step.
    #                     Same output block across the spatial (last, arbitrary)
    #                     grid axis => resident accumulator in VMEM.
    sj = pl.program_id(1)
    last = pl.num_programs(1) - 1

    @pl.when(sj == 0)
    def _init():
        sum_ref[...] = jnp.zeros_like(sum_ref)

    def _accum(mask_tail):
        x = x_ref[...].astype(jnp.float32)
        if mask_tail:
            lane = lax.broadcasted_iota(jnp.int32, x.shape, dimension=1)
            x = jnp.where(sj * ts + lane < hw, x, 0.0)
        sum_ref[...] += jnp.sum(x, axis=-1, keepdims=True)

    if hw % ts != 0:
        # Body is traced once: gate the (iota + compare + select) masking so
        # only the final ragged spatial tile pays for it.
        @pl.when(sj < last)
        def _interior():
            _accum(False)

        @pl.when(sj == last)
        def _tail():
            _accum(True)
    else:
        _accum(False)

    @pl.when(sj == last)
    def _finalize():
        sum_ref[...] *= jnp.float32(1.0 / hw)       # exact mean


def _head_kernel(pooled_ref, w_ref, shift_ref, y_ref):
    # pooled_ref: (N, C_in) fp32 means; w_ref: (C_in, C_out) BN-scaled weight;
    # shift_ref: (1, C_out) folded BN shift; y_ref: (N, C_out) fp32 result.
    y = jnp.dot(pooled_ref[...], w_ref[...], preferred_element_type=jnp.float32)
    y_ref[...] = jnp.maximum(y + shift_ref[...], 0.0)


def _broadcast_kernel(y_ref, o_ref):
    # y_ref: (N, C_out) fp32 ; o_ref: (N, C_out, TS2) lane-dense output tile.
    y = y_ref[...].astype(o_ref.dtype)          # cast the tiny tensor first
    o_ref[...] = jnp.broadcast_to(y[:, :, None], o_ref.shape)


# --------------------------------------------------------------------------
# Wrapper
# --------------------------------------------------------------------------
def aspp_pooling(x, conv_w, bn_gamma, bn_beta, bn_mean, bn_var, eps=1e-5,
                 spatial_tile=None, row_tile=None, out_spatial_tile=None):
    """x: (N, C_in, H, W) NCHW.  conv_w: (C_out, C_in, 1, 1)."""
    N, C_in, H, W = x.shape
    C_out = conv_w.shape[0]
    HW = H * W
    rows = N * C_in
    itemsize = jnp.dtype(x.dtype).itemsize

    budget = _vmem_budget_bytes()
    rt_auto, ts_auto = _phase1_tiles(rows, HW, itemsize, budget)
    rt = row_tile if row_tile is not None else rt_auto
    ts = spatial_tile if spatial_tile is not None else ts_auto
    ts2 = out_spatial_tile if out_spatial_tile is not None else _phase2_tile(
        N, C_out, HW, itemsize, budget)
    assert ts == HW or ts % 128 == 0, "phase-1 spatial tile must be lane-dense"
    assert rt == rows or rt % 8 == 0, "phase-1 row tile must be sublane-dense"
    assert ts2 == HW or ts2 % 128 == 0, "phase-2 spatial tile must be lane-dense"

    n_row = pl.cdiv(rows, rt)
    n_sp = pl.cdiv(HW, ts)
    n_sp2 = pl.cdiv(HW, ts2)

    # Fold eval-mode BN into the conv weight (scale) and a per-channel shift.
    scale = (bn_gamma / jnp.sqrt(bn_var + eps)).astype(jnp.float32)          # (C_out,)
    w_folded = (conv_w.reshape(C_out, C_in).astype(jnp.float32)
                * scale[:, None]).T                                          # (C_in, C_out)
    shift = (bn_beta.astype(jnp.float32)
             - bn_mean.astype(jnp.float32) * scale).reshape(1, C_out)

    x2d = x.reshape(rows, HW)

    # ---- Phase 1: tiled, pipelined spatial mean over flattened rows. ----
    sums = pl.pallas_call(
        functools.partial(_reduce_kernel, hw=HW, ts=ts),
        out_shape=jax.ShapeDtypeStruct((rows, 1), jnp.float32),
        grid_spec=pltpu.PrefetchScalarGridSpec(
            num_scalar_prefetch=0,
            grid=(n_row, n_sp),
            in_specs=[pl.BlockSpec((rt, ts), lambda ri, sj: (ri, sj))],
            out_specs=pl.BlockSpec((rt, 1), lambda ri, sj: (ri, 0)),
        ),
        compiler_params=pltpu.CompilerParams(
            dimension_semantics=("parallel", "arbitrary"),
            vmem_limit_bytes=budget),
        cost_estimate=pl.CostEstimate(
            flops=rows * HW, transcendentals=0,
            bytes_accessed=rows * HW * itemsize + rows * 4),
    )(x2d)

    pooled = sums.reshape(N, C_in)

    # ---- Head: tiny 1x1 conv (as matmul) + folded BN shift + ReLU. ----
    y = pl.pallas_call(
        _head_kernel,
        out_shape=jax.ShapeDtypeStruct((N, C_out), jnp.float32),
        grid_spec=pltpu.PrefetchScalarGridSpec(
            num_scalar_prefetch=0,
            grid=(1,),
            in_specs=[pl.BlockSpec((N, C_in), lambda i: (0, 0)),
                      pl.BlockSpec((C_in, C_out), lambda i: (0, 0)),
                      pl.BlockSpec((1, C_out), lambda i: (0, 0))],
            out_specs=pl.BlockSpec((N, C_out), lambda i: (0, 0)),
        ),
        compiler_params=pltpu.CompilerParams(
            dimension_semantics=("arbitrary",),
            vmem_limit_bytes=budget),
        cost_estimate=pl.CostEstimate(
            flops=2 * N * C_in * C_out, transcendentals=0,
            bytes_accessed=(N * C_in + C_in * C_out + C_out + N * C_out) * 4),
    )(pooled, w_folded, shift)

    # ---- Phase 2: write-only lane-dense broadcast (1x1 bilinear == bcast). ----
    out_flat = pl.pallas_call(
        _broadcast_kernel,
        out_shape=jax.ShapeDtypeStruct((N, C_out, HW), x.dtype),
        grid_spec=pltpu.PrefetchScalarGridSpec(
            num_scalar_prefetch=0,
            grid=(n_sp2,),
            in_specs=[pl.BlockSpec((N, C_out), lambda s: (0, 0))],
            out_specs=pl.BlockSpec((N, C_out, ts2), lambda s: (0, 0, s)),
        ),
        compiler_params=pltpu.CompilerParams(
            dimension_semantics=("parallel",),
            vmem_limit_bytes=budget),
        cost_estimate=pl.CostEstimate(
            flops=0, transcendentals=0,
            bytes_accessed=N * C_out * HW * itemsize + N * C_out * 4),
    )(y)

    return out_flat.reshape(N, C_out, H, W)


# --------------------------------------------------------------------------
# Pure-JAX reference + self-test
# --------------------------------------------------------------------------
def _reference(x, conv_w, bn_gamma, bn_beta, bn_mean, bn_var, eps=1e-5):
    N, C_in, H, W = x.shape
    C_out = conv_w.shape[0]
    pooled = jnp.mean(x.astype(jnp.float32), axis=(2, 3))          # (N, C_in)
    y = pooled @ conv_w.reshape(C_out, C_in).T.astype(jnp.float32)
    scale = bn_gamma / jnp.sqrt(bn_var + eps)
    y = jnp.maximum(y * scale + (bn_beta - bn_mean * scale), 0.0)
    return jnp.broadcast_to(y[:, :, None, None], (N, C_out, H, W)).astype(x.dtype)


if __name__ == "__main__":
    key = jax.random.PRNGKey(0)
    k_x1, k_x2, k_w, k_g, k_b, k_m, k_v = jax.random.split(key, 7)

    def make_params(c_in, c_out):
        conv_w = 0.1 * jax.random.normal(k_w, (c_out, c_in, 1, 1), jnp.float32)
        gamma = 1.0 + 0.1 * jax.random.normal(k_g, (c_out,), jnp.float32)
        beta = 0.1 * jax.random.normal(k_b, (c_out,), jnp.float32)
        mean = 0.05 * jax.random.normal(k_m, (c_out,), jnp.float32)
        var = jnp.abs(1.0 + 0.1 * jax.random.normal(k_v, (c_out,), jnp.float32))
        return conv_w, gamma, beta, mean, var

    # Case 1: automatic (budget-aware) tiling, small dense shape.
    N, C_in, C_out = 2, 4, 8
    conv_w, g, b, m, v = make_params(C_in, C_out)
    x1 = jax.random.normal(k_x1, (N, C_in, 16, 16), jnp.float32)
    out1 = jax.block_until_ready(aspp_pooling(x1, conv_w, g, b, m, v))
    ref1 = _reference(x1, conv_w, g, b, m, v)
    assert out1.shape == (N, C_out, 16, 16)
    assert jnp.allclose(out1, ref1, atol=1e-5, rtol=1e-5)

    # Case 2: ragged H*W (13*13 = 169) with forced small tiles: exercises the
    # multi-step accumulator, the gated boundary mask, row tiling across the
    # parallel axis, and the ragged lane-dense broadcast.
    N, C_in, C_out = 2, 16, 8
    conv_w, g, b, m, v = make_params(C_in, C_out)
    x2 = jax.random.normal(k_x2, (N, C_in, 13, 13), jnp.float32)
    out2 = jax.block_until_ready(
        aspp_pooling(x2, conv_w, g, b, m, v,
                     spatial_tile=128, row_tile=8, out_spatial_tile=128))
    ref2 = _reference(x2, conv_w, g, b, m, v)
    assert out2.shape == (N, C_out, 13, 13)
    assert jnp.allclose(out2, ref2, atol=1e-5, rtol=1e-5)

    print("KERNEL_OK")
</pallas_src>

<mosaic_0001>
module attributes {stable_mosaic.version = 11 : i64} {
  func.func @_reduce_kernel(%arg0: i32, %arg1: i32, %arg2: memref<8x256xf32, #tpu.memory_space<vmem>>, %arg3: memref<8x1xf32, #tpu.memory_space<vmem>>) attributes {dimension_semantics = [#tpu.dimension_semantics<parallel>, #tpu.dimension_semantics<arbitrary>], iteration_bounds = array<i64: 1, 1>, scalar_prefetch = 0 : i64, scratch_operands = 0 : i64, tpu.core_type = #tpu.core_type<tc>, window_params = [{transform_indices = @transform_0, window_bounds = array<i64: 8, 256>}, {transform_indices = @transform_1, window_bounds = array<i64: 8, 1>}]} {
    %c0_i32 = arith.constant 0 : i32
    %0 = arith.cmpi eq, %arg1, %c0_i32 : i32
    %1 = arith.extui %0 : i1 to i32
    %c0_i32_0 = arith.constant 0 : i32
    %2 = arith.cmpi ne, %1, %c0_i32_0 : i32
    scf.if %2 {
      %cst_8 = arith.constant 0.000000e+00 : f32
      %12 = vector.broadcast %cst_8 : f32 to vector<8x1xf32>
      %c0_9 = arith.constant 0 : index
      %c0_10 = arith.constant 0 : index
      %13 = vector.load %arg3[%c0_9, %c0_10] : memref<8x1xf32, #tpu.memory_space<vmem>>, vector<8x1xf32>
      tpu.vector_store %arg3[%c0_9, %c0_10], %12 {strides = array<i32>} : memref<8x1xf32, #tpu.memory_space<vmem>>, vector<8x1xf32>,
    } else {
    }
    %c0 = arith.constant 0 : index
    %c0_1 = arith.constant 0 : index
    %3 = vector.load %arg2[%c0, %c0_1] : memref<8x256xf32, #tpu.memory_space<vmem>>, vector<8x256xf32>
    %c0_2 = arith.constant 0 : index
    %c0_3 = arith.constant 0 : index
    %4 = vector.load %arg3[%c0_2, %c0_3] : memref<8x1xf32, #tpu.memory_space<vmem>>, vector<8x1xf32>
    %cst = arith.constant dense<0.000000e+00> : vector<8xf32>
    %5 = vector.multi_reduction <add>, %3, %cst [1] : vector<8x256xf32> to vector<8xf32>
    %6 = vector.shape_cast %5 : vector<8xf32> to vector<8x1xf32>
    %7 = arith.addf %4, %6 : vector<8x1xf32>
    %c0_4 = arith.constant 0 : index
    %c0_5 = arith.constant 0 : index
    %8 = vector.load %arg3[%c0_4, %c0_5] : memref<8x1xf32, #tpu.memory_space<vmem>>, vector<8x1xf32>
    tpu.vector_store %arg3[%c0_4, %c0_5], %7 {strides = array<i32>} : memref<8x1xf32, #tpu.memory_space<vmem>>, vector<8x1xf32>,
    %c0_i32_6 = arith.constant 0 : i32
    %9 = arith.cmpi eq, %arg1, %c0_i32_6 : i32
    %10 = arith.extui %9 : i1 to i32
    %c0_i32_7 = arith.constant 0 : i32
    %11 = arith.cmpi ne, %10, %c0_i32_7 : i32
    scf.if %11 {
      %c0_8 = arith.constant 0 : index
      %c0_9 = arith.constant 0 : index
      %12 = vector.load %arg3[%c0_8, %c0_9] : memref<8x1xf32, #tpu.memory_space<vmem>>, vector<8x1xf32>
      %cst_10 = arith.constant 3.906250e-03 : f32
      %13 = vector.broadcast %cst_10 : f32 to vector<8x1xf32>
      %14 = arith.mulf %12, %13 : vector<8x1xf32>
      %c0_11 = arith.constant 0 : index
      %c0_12 = arith.constant 0 : index
      %15 = vector.load %arg3[%c0_11, %c0_12] : memref<8x1xf32, #tpu.memory_space<vmem>>, vector<8x1xf32>
      tpu.vector_store %arg3[%c0_11, %c0_12], %14 {strides = array<i32>} : memref<8x1xf32, #tpu.memory_space<vmem>>, vector<8x1xf32>,
    } else {
    }
    return
  }
  func.func @transform_0(%arg0: i32, %arg1: i32) -> (i32, i32) {
    %c0_i32 = arith.constant 0 : i32
    return %arg0, %arg1 : i32, i32
  }
  func.func @transform_1(%arg0: i32, %arg1: i32) -> (i32, i32) {
    %c0_i32 = arith.constant 0 : i32
    %c0_i32_0 = arith.constant 0 : i32
    return %arg0, %c0_i32 : i32, i32
  }
}

</mosaic_0001>

<llo_original>
// kernel: tpu_custom_call.1
$region0: #{tpu_custom_call.1}
  #allocation0 [shape = 'u32[]', space=smem, size = 0x4, offset = 0x4, fixed_abs, tag = 'smem constant byte address 0x4 - core index']
  #allocation1 [shape = 'u32[144,128]{1,0:T(1,128)}', space=vmem, size = 0x12000, scoped, tag = 'internal scratch']
  %s0 = inlined_call_operand.hbm [shape: f32[8,256], index: 0, kind: input, shape index: {}]
  %s1 = inlined_call_operand.vmem [shape: f32[8,1], index: 1, kind: output, shape index: {}]
  %s2 = sld [smem:[#allocation0]]
  $region26: #{tpu_custom_call.1} parent=0
    _
  %s4 = ssub.s32 1, %s2
  %s5 = scalar_select 0, %s4, %s2
  $region1: #{tpu_custom_call.1} parent=0
    #allocation2 [shape = 'u8[8192]{0}', space=vmem, size = 0x2000, scoped, tag = 'input window, operand 0, single buffered']
    #allocation3 [shape = 's32[1]{0}', space=sflag, size = 0x4, scoped, tag = 'scoped memory for tpu_custom_call.1']
    %6 = vsyncpa [#allocation3], 0
    // Predicated region
    $region2: #{tpu_custom_call.1} parent=1 // pred_check
      _
    $region3: #{tpu_custom_call.1} parent=1 // pred_check_branch
      %8 = sbr.rel (0) target = $region5
    $region4: #{tpu_custom_call.1} parent=1 // pred_region
      %s10 = ssub.s32 256, 256
      %11 = vsyncadd [#allocation3], %s10
      %s13 = sshll.u32 [#allocation2], 4
      %s14 = int_to_ptr.vmem [resolvable:$true] %s13
      %16 = dma.hbm_to_vmem [thread:$0]  %s0, 256, %s14, [#allocation3]
    $region5: #{tpu_custom_call.1} parent=1 // pred_fallthru
      _
    // Predicated region
    $region6: #{tpu_custom_call.1} parent=1 // pred_check
      _
    $region7: #{tpu_custom_call.1} parent=1 // pred_check_branch
      %18 = sbr.rel (0) target = $region9
    $region8: #{tpu_custom_call.1} parent=1 // pred_region
      %19 = dma.done [#allocation3], 256
    $region9: #{tpu_custom_call.1} parent=1 // pred_fallthru
      _
    %p20 = scmp.eq.s32.totalorder 0, 0
    // Predicated region
    $region10: #{tpu_custom_call.1} parent=1 // pred_check
      %p21 = pneg %p20
    $region11: #{tpu_custom_call.1} parent=1 // pred_check_branch
      %23 = sbr.rel (%p21) target = $region13
    $region12: #{tpu_custom_call.1} parent=1 // pred_region
      %vm24 = vcmask 7168
      %25 = vst.msk [vmem:[%s1] sm:$0xff] %vm24, 0.0
    $region13: #{tpu_custom_call.1} parent=1 // pred_fallthru
      _
    %v26 = vld [vmem:[#allocation2] sm:$0xff]
    %v27 = vld [vmem:[#allocation2 + $0x8] sm:$0xff]
    %v28 = vld [vmem:[%s1] sm:$0xff]
    %v29 = vadd.f32 %v26, %v27
    %30 = vadd.xlane.f32.xlu0 %v29
    %v31 = vpop.xlane.xlu0 %30
    %v32 = vadd.f32 %v28, %v31
    %vm33 = vcmask 7168
    %34 = vst.msk [vmem:[%s1] sm:$0xff] %vm33, %v32
    // Predicated region
    $region14: #{tpu_custom_call.1} parent=1 // pred_check
      %p35 = pneg %p20
    $region15: #{tpu_custom_call.1} parent=1 // pred_check_branch
      %37 = sbr.rel (%p35) target = $region17
    $region16: #{tpu_custom_call.1} parent=1 // pred_region
      %v38 = vld [vmem:[%s1] sm:$0xff]
      %v39 = vmul.f32 %v38, 0.00390625
      %40 = vst.msk [vmem:[%s1] sm:$0xff] %vm33, %v39
    $region17: #{tpu_custom_call.1} parent=1 // pred_fallthru
      _
    // Predicated region
    $region18: #{tpu_custom_call.1} parent=1 // pred_check
      _
    $region19: #{tpu_custom_call.1} parent=1 // pred_check_branch
      %42 = sbr.rel (0) target = $region21
    $region20: #{tpu_custom_call.1} parent=1 // pred_region
      _
    $region21: #{tpu_custom_call.1} parent=1 // pred_fallthru
      _
    // Predicated region
    $region22: #{tpu_custom_call.1} parent=1 // pred_check
      _
    $region23: #{tpu_custom_call.1} parent=1 // pred_check_branch
      %44 = sbr.rel (0) target = $region25
    $region24: #{tpu_custom_call.1} parent=1 // pred_region
      _
    $region25: #{tpu_custom_call.1} parent=1 // pred_fallthru
      _
    %45 = vsyncpa [#allocation3], 1

</llo_original>
